<compile_context>
chip_gen: v6e
topology: v6e:2x2x1
jax: 0.10.0
libtpu: 0.0.40
codegen_flags: <defaults>
</compile_context>

<pallas_src>
import functools

import jax
import jax.numpy as jnp
from jax.experimental import pallas as pl
from jax.experimental.pallas import tpu as pltpu


def _round_up(a: int, b: int) -> int:
    return ((a + b - 1) // b) * b


def _vq_kernel(x_ref, emb_ref, e2_ref, quant_ref, idx_ref, mse_ref,
               *, hw_total: int, tile_hw: int):
    """Per-tile VQ hot path, lane-major (pixels on the 128-lane axis).

    x_ref:     (1, C, TILE)   input tile (one batch element, hw slice)
    emb_ref:   (K, D)         codebook (resident across tiles)
    e2_ref:    (K, 1)         per-code squared norms (resident, hoisted)
    quant_ref: (1, C, TILE)   quantized tile (lands directly in NCHW layout)
    idx_ref:   (1, 1, TILE)   int32 argmin indices (lane-dense)
    mse_ref:   (1, 1, 1, 1)   per-tile sum of squared error
    """
    x = x_ref[0]                         # (C, TILE) f32
    e = emb_ref[...]                     # (K, D)
    e2 = e2_ref[...]                     # (K, 1)
    K = e.shape[0]

    # Squared distances up to the per-pixel constant ||x||^2 (argmin-invariant).
    # MXU matmul: K on sublanes, pixels on lanes.
    dist = e2 - 2.0 * jnp.dot(e, x, preferred_element_type=jnp.float32)   # (K, TILE)

    # argmin over K (sublane axis); first occurrence on ties (matches torch.argmin).
    iota_k = jax.lax.broadcasted_iota(jnp.int32, dist.shape, 0)
    dmin = jnp.min(dist, axis=0, keepdims=True)                           # (1, TILE)
    idx = jnp.min(jnp.where(dist == dmin, iota_k, K), axis=0, keepdims=True)  # (1, TILE)

    # Transient one-hot for the gather-matmul only (never written to HBM).
    enc = (iota_k == idx).astype(jnp.float32)                             # (K, TILE)

    # quantized = codebook gathered via one-hot matmul (MXU), contracting over K;
    # no separate transposed-codebook input needed.
    quant = jax.lax.dot_general(
        e, enc, dimension_numbers=(((0,), (0,)), ((), ())),
        preferred_element_type=jnp.float32)                               # (D, TILE)

    diff = quant - x
    sq = diff * diff
    if (hw_total % tile_hw) != 0:
        # Mask out padded pixel columns in the last hw tile so the per-tile
        # squared-error partials stay exact.
        col = (jax.lax.broadcasted_iota(jnp.int32, (1, tile_hw), 1)
               + pl.program_id(1) * tile_hw)
        sq = jnp.where(col < hw_total, sq, 0.0)

    quant_ref[0] = quant.astype(quant_ref.dtype)
    idx_ref[0] = idx
    mse_ref[...] = jnp.sum(sq).reshape(1, 1, 1, 1)


def vector_quantizer_forward(x_nchw, embedding, commitment_cost: float,
                             *, tile_hw: int | None = None,
                             vmem_limit_bytes: int | None = None):
    """Pallas-backed equivalent of VectorQuantizer.forward (forward values).

    Returns (loss, quantized_nchw, perplexity, encodings) matching PyTorch.
    """
    N, C, H, W = x_nchw.shape
    K, D = embedding.shape
    assert C == D, "channel dim must equal embedding_dim"
    HW = H * W
    M = N * HW

    # Free reshape: NCHW is already (C, HW)-lane-major within each batch element.
    x3 = x_nchw.reshape(N, C, HW).astype(jnp.float32)

    # Hoisted codebook quantities (resident in VMEM across all grid steps).
    emb = embedding.astype(jnp.float32)             # (K, D)
    e2 = jnp.sum(emb * emb, axis=1, keepdims=True)  # (K, 1)

    # --- per-chip VMEM budget (v7x has 64 MiB physical; v5e/v6e have 128 MiB) ---
    if vmem_limit_bytes is None:
        try:
            vmem_cap = pltpu.get_tpu_info().vmem_capacity_bytes
        except Exception:
            vmem_cap = 64 * 1024 * 1024          # conservative: fits every generation
        vmem_limit_bytes = min(max(vmem_cap - 16 * 1024 * 1024, 32 * 1024 * 1024),
                               112 * 1024 * 1024)
    vmem_limit_bytes = int(vmem_limit_bytes)

    # --- tile sizing: largest lane-dense tile that fits the double-buffered blocks ---
    if tile_hw is None:
        resident = 2 * (K * D + K) * 4                      # codebook + ||e||^2, double-buffered
        budget = int(vmem_limit_bytes * 0.75) - resident
        per_col = 8 * (2 * C + 2)                           # 2 bufs x 4 B x (x + quant + idx)
        tile_hw = max(128, (budget // per_col) // 128 * 128)
        tile_hw = min(tile_hw, 32768)
    tile_hw = max(128, _round_up(min(tile_hw, _round_up(HW, 128)), 128))

    num_hw_tiles = pl.cdiv(HW, tile_hw)
    # v7x has 2 TensorCores: keep the parallel grid at >= 2 steps when possible.
    if N * num_hw_tiles < 2 and HW > 128:
        tile_hw = _round_up(pl.cdiv(HW, 2), 128)
        num_hw_tiles = pl.cdiv(HW, tile_hw)
    hw_pad = num_hw_tiles * tile_hw
    if hw_pad != HW:
        x3 = jnp.pad(x3, ((0, 0), (0, 0), (0, hw_pad - HW)))

    kernel = functools.partial(_vq_kernel, hw_total=HW, tile_hw=tile_hw)

    quant3, idx3, mse_part = pl.pallas_call(
        kernel,
        out_shape=(
            jax.ShapeDtypeStruct((N, C, hw_pad), jnp.float32),           # quantized (NCHW layout)
            jax.ShapeDtypeStruct((N, 1, hw_pad), jnp.int32),             # argmin indices
            jax.ShapeDtypeStruct((N, num_hw_tiles, 1, 1), jnp.float32),  # per-tile sq. error sums
        ),
        grid_spec=pltpu.PrefetchScalarGridSpec(
            num_scalar_prefetch=0,
            grid=(N, num_hw_tiles),
            in_specs=[
                pl.BlockSpec((1, C, tile_hw), lambda n, t: (n, 0, t)),   # x tile
                pl.BlockSpec((K, D), lambda n, t: (0, 0)),               # codebook (resident)
                pl.BlockSpec((K, 1), lambda n, t: (0, 0)),               # ||e||^2 (resident)
            ],
            out_specs=(
                pl.BlockSpec((1, C, tile_hw), lambda n, t: (n, 0, t)),
                pl.BlockSpec((1, 1, tile_hw), lambda n, t: (n, 0, t)),
                pl.BlockSpec((1, 1, 1, 1), lambda n, t: (n, t, 0, 0)),
            ),
        ),
        compiler_params=pltpu.CompilerParams(
            dimension_semantics=("parallel", "parallel"),   # tiles independent (partial sums)
            vmem_limit_bytes=vmem_limit_bytes,
        ),
    )(x3, emb, e2)

    # --- finish scalar reductions in plain JAX from per-tile partials ---
    mse = jnp.sum(mse_part) / jnp.float32(M * D)
    # forward value: q_latent_loss == e_latent_loss == mse (detach only affects grads)
    loss = (1.0 + commitment_cost) * mse

    if hw_pad != HW:
        quant3 = quant3[:, :, :HW]
        idx3 = idx3[:, :, :HW]
    quantized = quant3.reshape(N, C, H, W)                  # already NCHW — no transpose

    # Dense (M, K) encodings only because the module's signature returns them.
    idx_flat = idx3.reshape(M)
    encodings = jax.nn.one_hot(idx_flat, K, dtype=jnp.float32)
    avg_probs = jnp.mean(encodings, axis=0)
    perplexity = jnp.exp(-jnp.sum(avg_probs * jnp.log(avg_probs + 1e-10)))
    return loss, quantized, perplexity, encodings


def _reference(x_nchw, embedding, commitment_cost):
    """Pure-JAX reference mirroring the PyTorch forward."""
    x = jnp.transpose(x_nchw, (0, 2, 3, 1))
    shp = x.shape
    flat = x.reshape(-1, embedding.shape[1])
    dist = (jnp.sum(flat ** 2, axis=1, keepdims=True)
            + jnp.sum(embedding ** 2, axis=1)
            - 2.0 * flat @ embedding.T)
    idx = jnp.argmin(dist, axis=1)
    enc = jax.nn.one_hot(idx, embedding.shape[0], dtype=jnp.float32)
    quant = (enc @ embedding).reshape(shp)
    mse = jnp.mean((quant - x) ** 2)
    loss = mse + commitment_cost * mse
    avg = jnp.mean(enc, axis=0)
    perp = jnp.exp(-jnp.sum(avg * jnp.log(avg + 1e-10)))
    return loss, jnp.transpose(quant, (0, 3, 1, 2)), perp, enc


if __name__ == "__main__":
    # Module hyper-params (small, consistent with the forward pass).
    num_embeddings = 16       # K
    embedding_dim = 4         # D == channel dim C
    commitment_cost = 0.25

    key = jax.random.PRNGKey(0)
    k_emb, k_x = jax.random.split(key)

    # Deterministic init mirroring nn.Embedding.weight.data.uniform_(-1/K, 1/K).
    embedding = jax.random.uniform(
        k_emb, (num_embeddings, embedding_dim), jnp.float32,
        minval=-1.0 / num_embeddings, maxval=1.0 / num_embeddings)

    # Input in NCHW like the PyTorch module expects: HW = 256, M = 512 pixels.
    x = jax.random.normal(k_x, (2, embedding_dim, 16, 16), jnp.float32)

    # 1) small tiles -> (2 batches x 2 hw tiles) grid, exercises the pipelined path.
    out_small = jax.block_until_ready(
        vector_quantizer_forward(x, embedding, commitment_cost, tile_hw=128))
    # 2) auto-sized tiles (VMEM-limited path used at realistic shapes).
    out_auto = jax.block_until_ready(
        vector_quantizer_forward(x, embedding, commitment_cost))

    r_loss, r_quant, r_perp, r_enc = _reference(x, embedding, commitment_cost)
    for loss, quantized, perplexity, encodings in (out_small, out_auto):
        assert jnp.allclose(loss, r_loss, atol=1e-5), (loss, r_loss)
        assert jnp.allclose(quantized, r_quant, atol=1e-5)
        assert jnp.allclose(perplexity, r_perp, atol=1e-4)
        assert jnp.allclose(encodings, r_enc)

    print("KERNEL_OK")
</pallas_src>

<mosaic_0001>
module attributes {stable_mosaic.version = 11 : i64} {
  func.func @_vq_kernel(%arg0: i32, %arg1: i32, %arg2: memref<1x4x128xf32, #tpu.memory_space<vmem>>, %arg3: memref<16x4xf32, #tpu.memory_space<vmem>>, %arg4: memref<16x1xf32, #tpu.memory_space<vmem>>, %arg5: memref<1x4x128xf32, #tpu.memory_space<vmem>>, %arg6: memref<1x1x128xi32, #tpu.memory_space<vmem>>, %arg7: memref<1x1x1x1xf32, #tpu.memory_space<vmem>>) attributes {dimension_semantics = [#tpu.dimension_semantics<parallel>, #tpu.dimension_semantics<parallel>], iteration_bounds = array<i64: 2, 2>, scalar_prefetch = 0 : i64, scratch_operands = 0 : i64, tpu.core_type = #tpu.core_type<tc>, window_params = [{transform_indices = @transform_0, window_bounds = array<i64: 1, 4, 128>}, {pipeline_mode = #tpu.pipeline_mode<synchronous>, transform_indices = @transform_1, window_bounds = array<i64: 16, 4>}, {pipeline_mode = #tpu.pipeline_mode<synchronous>, transform_indices = @transform_2, window_bounds = array<i64: 16, 1>}, {transform_indices = @transform_3, window_bounds = array<i64: 1, 4, 128>}, {transform_indices = @transform_4, window_bounds = array<i64: 1, 1, 128>}, {transform_indices = @transform_5, window_bounds = array<i64: 1, 1, 1, 1>}]} {
    %c0 = arith.constant 0 : index
    %c0_0 = arith.constant 0 : index
    %c0_1 = arith.constant 0 : index
    %0 = vector.load %arg2[%c0, %c0_0, %c0_1] : memref<1x4x128xf32, #tpu.memory_space<vmem>>, vector<1x4x128xf32>
    %1 = vector.shape_cast %0 : vector<1x4x128xf32> to vector<4x128xf32>
    %c0_2 = arith.constant 0 : index
    %c0_3 = arith.constant 0 : index
    %2 = vector.load %arg3[%c0_2, %c0_3] : memref<16x4xf32, #tpu.memory_space<vmem>>, vector<16x4xf32>
    %c0_4 = arith.constant 0 : index
    %c0_5 = arith.constant 0 : index
    %3 = vector.load %arg4[%c0_4, %c0_5] : memref<16x1xf32, #tpu.memory_space<vmem>>, vector<16x1xf32>
    %cst = arith.constant dense<0.000000e+00> : vector<16x128xf32>
    %4 = tpu.matmul %2, %1, %cst {dimension_numbers = #tpu.dot_dimension_numbers<[1], [0], [0], [1], [0, 0, 1, 1], [], []>} : vector<16x4xf32>, vector<4x128xf32>, vector<16x128xf32> -> vector<16x128xf32>
    %cst_6 = arith.constant 2.000000e+00 : f32
    %5 = vector.broadcast %cst_6 : f32 to vector<16x128xf32>
    %6 = arith.mulf %5, %4 : vector<16x128xf32>
    %7 = vector.broadcast %3 : vector<16x1xf32> to vector<16x128xf32>
    %8 = arith.subf %7, %6 : vector<16x128xf32>
    %9 = tpu.iota {dimensions = array<i32: 0>} : vector<16x128xi32>
    %cst_7 = arith.constant dense<0x7F800000> : vector<128xf32>
    %10 = vector.multi_reduction <minimumf>, %8, %cst_7 [0] : vector<16x128xf32> to vector<128xf32>
    %11 = vector.shape_cast %10 : vector<128xf32> to vector<1x128xf32>
    %12 = vector.broadcast %11 : vector<1x128xf32> to vector<16x128xf32>
    %13 = arith.cmpf oeq, %8, %12 : vector<16x128xf32>
    %c16_i32 = arith.constant 16 : i32
    %14 = vector.broadcast %c16_i32 : i32 to vector<16x128xi32>
    %15 = arith.select %13, %9, %14 : vector<16x128xi1>, vector<16x128xi32>
    %cst_8 = arith.constant dense<2147483647> : vector<128xi32>
    %16 = vector.multi_reduction <minsi>, %15, %cst_8 [0] : vector<16x128xi32> to vector<128xi32>
    %17 = vector.shape_cast %16 : vector<128xi32> to vector<1x128xi32>
    %18 = vector.broadcast %17 : vector<1x128xi32> to vector<16x128xi32>
    %19 = arith.cmpi eq, %9, %18 : vector<16x128xi32>
    %20 = arith.extui %19 : vector<16x128xi1> to vector<16x128xi32>
    %21 = arith.sitofp %20 : vector<16x128xi32> to vector<16x128xf32>
    %cst_9 = arith.constant dense<0.000000e+00> : vector<4x128xf32>
    %22 = tpu.matmul %2, %21, %cst_9 {dimension_numbers = #tpu.dot_dimension_numbers<[0], [0], [1], [1], [0, 1, 1, 1], [], []>} : vector<16x4xf32>, vector<16x128xf32>, vector<4x128xf32> -> vector<4x128xf32>
    %23 = arith.subf %22, %1 : vector<4x128xf32>
    %24 = arith.mulf %23, %23 : vector<4x128xf32>
    %c0_10 = arith.constant 0 : index
    %c0_11 = arith.constant 0 : index
    %c0_12 = arith.constant 0 : index
    %25 = vector.load %arg5[%c0_10, %c0_11, %c0_12] : memref<1x4x128xf32, #tpu.memory_space<vmem>>, vector<1x4x128xf32>
    %26 = vector.shape_cast %25 : vector<1x4x128xf32> to vector<4x128xf32>
    %27 = vector.shape_cast %22 : vector<4x128xf32> to vector<1x4x128xf32>
    tpu.vector_store %arg5[%c0_10, %c0_11, %c0_12], %27 {strides = array<i32>} : memref<1x4x128xf32, #tpu.memory_space<vmem>>, vector<1x4x128xf32>,
    %c0_13 = arith.constant 0 : index
    %c0_14 = arith.constant 0 : index
    %c0_15 = arith.constant 0 : index
    %28 = vector.load %arg6[%c0_13, %c0_14, %c0_15] : memref<1x1x128xi32, #tpu.memory_space<vmem>>, vector<1x1x128xi32>
    %29 = vector.shape_cast %28 : vector<1x1x128xi32> to vector<1x128xi32>
    %30 = vector.shape_cast %17 : vector<1x128xi32> to vector<1x1x128xi32>
    tpu.vector_store %arg6[%c0_13, %c0_14, %c0_15], %30 {strides = array<i32>} : memref<1x1x128xi32, #tpu.memory_space<vmem>>, vector<1x1x128xi32>,
    %31 = vector.shape_cast %24 : vector<4x128xf32> to vector<1x4x128xf32>
    %cst_16 = arith.constant dense<0.000000e+00> : vector<1xf32>
    %32 = vector.multi_reduction <add>, %31, %cst_16 [1, 2] : vector<1x4x128xf32> to vector<1xf32>
    %33 = vector.shape_cast %32 : vector<1xf32> to vector<1x1x1xf32>
    %34 = vector.extract %33[0, 0, 0] : f32 from vector<1x1x1xf32>
    %35 = vector.broadcast %34 : f32 to vector<1x1x1x1xf32>
    %c0_17 = arith.constant 0 : index
    %c0_18 = arith.constant 0 : index
    %c0_19 = arith.constant 0 : index
    %c0_20 = arith.constant 0 : index
    %36 = vector.load %arg7[%c0_17, %c0_18, %c0_19, %c0_20] : memref<1x1x1x1xf32, #tpu.memory_space<vmem>>, vector<1x1x1x1xf32>
    tpu.vector_store %arg7[%c0_17, %c0_18, %c0_19, %c0_20], %35 {strides = array<i32>} : memref<1x1x1x1xf32, #tpu.memory_space<vmem>>, vector<1x1x1x1xf32>,
    return
  }
  func.func @transform_0(%arg0: i32, %arg1: i32) -> (i32, i32, i32) {
    %c0_i32 = arith.constant 0 : i32
    %c0_i32_0 = arith.constant 0 : i32
    return %arg0, %c0_i32, %arg1 : i32, i32, i32
  }
  func.func @transform_1(%arg0: i32, %arg1: i32) -> (i32, i32) {
    %c0_i32 = arith.constant 0 : i32
    %c0_i32_0 = arith.constant 0 : i32
    %c0_i32_1 = arith.constant 0 : i32
    return %c0_i32, %c0_i32_0 : i32, i32
  }
  func.func @transform_2(%arg0: i32, %arg1: i32) -> (i32, i32) {
    %c0_i32 = arith.constant 0 : i32
    %c0_i32_0 = arith.constant 0 : i32
    %c0_i32_1 = arith.constant 0 : i32
    return %c0_i32, %c0_i32_0 : i32, i32
  }
  func.func @transform_3(%arg0: i32, %arg1: i32) -> (i32, i32, i32) {
    %c0_i32 = arith.constant 0 : i32
    %c0_i32_0 = arith.constant 0 : i32
    return %arg0, %c0_i32, %arg1 : i32, i32, i32
  }
  func.func @transform_4(%arg0: i32, %arg1: i32) -> (i32, i32, i32) {
    %c0_i32 = arith.constant 0 : i32
    %c0_i32_0 = arith.constant 0 : i32
    return %arg0, %c0_i32, %arg1 : i32, i32, i32
  }
  func.func @transform_5(%arg0: i32, %arg1: i32) -> (i32, i32, i32, i32) {
    %c0_i32 = arith.constant 0 : i32
    %c0_i32_0 = arith.constant 0 : i32
    %c0_i32_1 = arith.constant 0 : i32
    return %arg0, %arg1, %c0_i32, %c0_i32_0 : i32, i32, i32, i32
  }
}

</mosaic_0001>

<llo_original>
// kernel: tpu_custom_call.1
$region0: #{tpu_custom_call.1}
  #allocation0 [shape = 'u32[]', space=smem, size = 0x4, offset = 0x4, fixed_abs, tag = 'smem constant byte address 0x4 - core index']
  #allocation1 [shape = 'u32[144,128]{1,0:T(1,128)}', space=vmem, size = 0x12000, scoped, tag = 'internal scratch']
  %s0 = inlined_call_operand.vmem [shape: f32[2,4,256], index: 0, kind: input, shape index: {}]
  %s1 = inlined_call_operand.vmem [shape: f32[16,4], index: 1, kind: input, shape index: {}]
  %s2 = inlined_call_operand.vmem [shape: f32[16,1], index: 2, kind: input, shape index: {}]
  %s3 = inlined_call_operand.hbm [shape: f32[2,4,256], index: 3, kind: output, shape index: {0}]
  %s4 = inlined_call_operand.hbm [shape: s32[2,1,256], index: 4, kind: output, shape index: {1}]
  %s5 = inlined_call_operand.vmem [shape: f32[2,2,1,1], index: 5, kind: output, shape index: {2}]
  %6 = xla_tuple %s3, %s4, %s5
  %s7 = sld [smem:[#allocation0]]
  $region61: #{tpu_custom_call.1} parent=0
    _
  %s9 = ssub.s32 1, %s7
  %s10 = scalar_select 0, %s9, %s7
  $region1: #{tpu_custom_call.1} parent=0
    #allocation2 [shape = 'u8[4096]{0}', space=vmem, size = 0x1000, scoped, tag = 'output window, operand 0']
    #allocation3 [shape = 's32[2]{0}', space=sflag, size = 0x8, scoped, tag = 'scoped memory for tpu_custom_call.1']
    #allocation4 [shape = 'u8[1024]{0}', space=vmem, size = 0x400, scoped, tag = 'output window, operand 1']
    #allocation5 [shape = 's32[2]{0}', space=sflag, size = 0x8, scoped, tag = 'scoped memory for tpu_custom_call.1']
    %11 = vsyncpa [#allocation3], 0
    %s12 = scalar_lea.sflag [#allocation3], 1
    %13 = vsyncpa %s12, 0
    %14 = vsyncpa [#allocation5], 0
    %s15 = scalar_lea.sflag [#allocation5], 1
    %16 = vsyncpa %s15, 0
    loop: start=0, step=1, limit=6
    $region2: #{tpu_custom_call.1} parent=1 // loop_pre_header
      _
    $region3: #{tpu_custom_call.1} parent=1 // loop_header
      %s18 = sphi 0, %s22
      %p19 = scmp.ge.s32.totalorder %s18, 6
      %s25 = sphi 0, %s37
      %s26 = sphi 0, %s33
      %s27 = sphi 0, %s25
      %s28 = sphi 0, %s26
      %s29 = sphi 0, %s27
      %s30 = sphi 0, %s28
      %s42 = sphi 0, %s44
      %s45 = sphi 0, %s42
      %s46 = sphi 0, %s45
      %s62 = sphi 0, %s46
      %s66 = sphi 0, %s66
      %s68 = sphi 0, %s66
      %s69 = sphi 0, %s68
      %s83 = sphi 0, %s69
      %s87 = sphi 0, %s87
      %s89 = sphi 0, %s87
      %s90 = sphi 0, %s89
      %s104 = sphi 0, %s90
      %s112 = sphi 0, %s114
      %s115 = sphi 0, %s112
      %s116 = sphi 0, %s115
      %s132 = sphi 0, %s116
      %s140 = sphi 0, %s142
      %s143 = sphi 0, %s140
      %s144 = sphi 0, %s143
      %s160 = sphi 0, %s144
      %s168 = sphi 0, %s170
      %s171 = sphi 0, %s168
      %s172 = sphi 0, %s171
      %s188 = sphi 0, %s172
    $region4: #{tpu_custom_call.1} parent=1 // loop_header_branch
      %21 = sbr.rel (%p19) target = $region8
    $region5: #{tpu_custom_call.1} parent=1 // loop_body
      %s23 = ssub.s32 %s18, 1
      %s24 = ssub.s32 %s18, 2
      %s31 = sadd.s32 1, %s26
      %p32 = scmp.ge.s32.totalorder %s31, 2
      %s33 = scalar_select %p32, 0, %s31
      %s34 = sadd.s32 1, %s25
      %s35 = scalar_select %p32, %s34, %s25
      %p36 = scmp.ge.s32.totalorder %s35, 2
      %s37 = scalar_select %p36, 0, %s35
      %s38 = ssub.s32 %s25, %s37
      %s39 = ssub.s32 %s26, %s33
      %s40 = sor.u32 %s38, %s39
      %p41 = scmp.eq.s32.totalorder %s40, 0
      %s43 = sadd.s32 %s42, 1
      %s44 = scalar_select %p41, %s42, %s43
      %p47 = pneg %p41
      %p48 = scmp.eq.s32.totalorder %s18, 3
      %p49 = por %p47, %p48
      %p50 = scmp.ne.s32.totalorder %s42, %s45
      %p51 = scmp.eq.s32.totalorder %s18, 0
      %p52 = por %p50, %p51
      %p53 = scmp.ne.s32.totalorder %s42, %s45
      %p54 = scmp.eq.s32.totalorder %s23, 3
      %p55 = por %p53, %p54
      %p56 = scmp.ne.s32.totalorder %s45, %s46
      %p57 = scmp.eq.s32.totalorder %s23, 0
      %p58 = por %p56, %p57
      %p59 = scmp.ne.s32.totalorder %s45, %s46
      %p60 = scmp.eq.s32.totalorder %s24, 3
      %p61 = por %p59, %p60
      %p63 = scmp.ne.s32.totalorder %s46, %s62
      %p64 = scmp.eq.s32.totalorder %s24, 0
      %p65 = por %p63, %p64
      %s67 = sadd.s32 %s66, 1
      %p70 = scmp.eq.s32.totalorder %s18, 3
      %p71 = scmp.ne.s32.totalorder %s66, %s68
      %p72 = scmp.eq.s32.totalorder %s18, 0
      %p73 = por %p71, %p72
      %p74 = scmp.ne.s32.totalorder %s66, %s68
      %p75 = scmp.eq.s32.totalorder %s23, 3
      %p76 = por %p74, %p75
      %p77 = scmp.ne.s32.totalorder %s68, %s69
      %p78 = scmp.eq.s32.totalorder %s23, 0
      %p79 = por %p77, %p78
      %p80 = scmp.ne.s32.totalorder %s68, %s69
      %p81 = scmp.eq.s32.totalorder %s24, 3
      %p82 = por %p80, %p81
      %p84 = scmp.ne.s32.totalorder %s69, %s83
      %p85 = scmp.eq.s32.totalorder %s24, 0
      %p86 = por %p84, %p85
      %s88 = sadd.s32 %s87, 1
      %p91 = scmp.eq.s32.totalorder %s18, 3
      %p92 = scmp.ne.s32.totalorder %s87, %s89
      %p93 = scmp.eq.s32.totalorder %s18, 0
      %p94 = por %p92, %p93
      %p95 = scmp.ne.s32.totalorder %s87, %s89
      %p96 = scmp.eq.s32.totalorder %s23, 3
      %p97 = por %p95, %p96
      %p98 = scmp.ne.s32.totalorder %s89, %s90
      %p99 = scmp.eq.s32.totalorder %s23, 0
      %p100 = por %p98, %p99
      %p101 = scmp.ne.s32.totalorder %s89, %s90
      %p102 = scmp.eq.s32.totalorder %s24, 3
      %p103 = por %p101, %p102
      %p105 = scmp.ne.s32.totalorder %s90, %s104
      %p106 = scmp.eq.s32.totalorder %s24, 0
      %p107 = por %p105, %p106
      %s108 = ssub.s32 %s25, %s37
      %s109 = ssub.s32 %s26, %s33
      %s110 = sor.u32 %s108, %s109
      %p111 = scmp.eq.s32.totalorder %s110, 0
      %s113 = sadd.s32 %s112, 1
      %s114 = scalar_select %p111, %s112, %s113
      %p117 = pneg %p111
      %p118 = scmp.eq.s32.totalorder %s18, 3
      %p119 = por %p117, %p118
      %p120 = scmp.ne.s32.totalorder %s112, %s115
      %p121 = scmp.eq.s32.totalorder %s18, 0
      %p122 = por %p120, %p121
      %p123 = scmp.ne.s32.totalorder %s112, %s115
      %p124 = scmp.eq.s32.totalorder %s23, 3
      %p125 = por %p123, %p124
      %p126 = scmp.ne.s32.totalorder %s115, %s116
      %p127 = scmp.eq.s32.totalorder %s23, 0
      %p128 = por %p126, %p127
      %p129 = scmp.ne.s32.totalorder %s115, %s116
      %p130 = scmp.eq.s32.totalorder %s24, 3
      %p131 = por %p129, %p130
      %p133 = scmp.ne.s32.totalorder %s116, %s132
      %p134 = scmp.eq.s32.totalorder %s24, 0
      %p135 = por %p133, %p134
      %s136 = ssub.s32 %s25, %s37
      %s137 = ssub.s32 %s26, %s33
      %s138 = sor.u32 %s136, %s137
      %p139 = scmp.eq.s32.totalorder %s138, 0
      %s141 = sadd.s32 %s140, 1
      %s142 = scalar_select %p139, %s140, %s141
      %p145 = pneg %p139
      %p146 = scmp.eq.s32.totalorder %s18, 3
      %p147 = por %p145, %p146
      %p148 = scmp.ne.s32.totalorder %s140, %s143
      %p149 = scmp.eq.s32.totalorder %s18, 0
      %p150 = por %p148, %p149
      %p151 = scmp.ne.s32.totalorder %s140, %s143
      %p152 = scmp.eq.s32.totalorder %s23, 3
      %p153 = por %p151, %p152
      %p154 = scmp.ne.s32.totalorder %s143, %s144
      %p155 = scmp.eq.s32.totalorder %s23, 0
      %p156 = por %p154, %p155
      %p157 = scmp.ne.s32.totalorder %s143, %s144
      %p158 = scmp.eq.s32.totalorder %s24, 3
      %p159 = por %p157, %p158
      %p161 = scmp.ne.s32.totalorder %s144, %s160
      %p162 = scmp.eq.s32.totalorder %s24, 0
      %p163 = por %p161, %p162
      %s164 = ssub.s32 %s25, %s37
      %s165 = ssub.s32 %s26, %s33
      %s166 = sor.u32 %s164, %s165
      %p167 = scmp.eq.s32.totalorder %s166, 0
      %s169 = sadd.s32 %s168, 1
      %s170 = scalar_select %p167, %s168, %s169
      %p173 = pneg %p167
      %p174 = scmp.eq.s32.totalorder %s18, 3
      %p175 = por %p173, %p174
      %p176 = scmp.ne.s32.totalorder %s168, %s171
      %p177 = scmp.eq.s32.totalorder %s18, 0
      %p178 = por %p176, %p177
      %p179 = scmp.ne.s32.totalorder %s168, %s171
      %p180 = scmp.eq.s32.totalorder %s23, 3
      %p181 = por %p179, %p180
      %p182 = scmp.ne.s32.totalorder %s171, %s172
      %p183 = scmp.eq.s32.totalorder %s23, 0
      %p184 = por %p182, %p183
      %p185 = scmp.ne.s32.totalorder %s171, %s172
      %p186 = scmp.eq.s32.totalorder %s24, 3
      %p187 = por %p185, %p186
      %p189 = scmp.ne.s32.totalorder %s172, %s188
      %p190 = scmp.eq.s32.totalorder %s24, 0
      %p191 = por %p189, %p190
      %p192 = scmp.le.s32.totalorder 1, %s18
      %p193 = scmp.lt.s32.totalorder %s18, 5
      %p194 = pnand %p192, %p193
      %p195 = pneg %p194
      // Predicated region
      $region9: #{tpu_custom_call.1} parent=5 // pred_check
        _
      $region10: #{tpu_custom_call.1} parent=5 // pred_check_branch
        %197 = sbr.rel (%p194) target = $region12
      $region11: #{tpu_custom_call.1} parent=5 // pred_region
        %s198 = ssub.s32 %s18, 1
        // Predicated region
        $region13: #{tpu_custom_call.1} parent=11 // pred_check
          %p199 = pneg %p79
        $region14: #{tpu_custom_call.1} parent=11 // pred_check_branch
          %201 = sbr.rel (%p199) target = $region16
        $region15: #{tpu_custom_call.1} parent=11 // pred_region
          _
        $region16: #{tpu_custom_call.1} parent=11 // pred_fallthru
          _
        // Predicated region
        $region17: #{tpu_custom_call.1} parent=11 // pred_check
          %p202 = pneg %p100
        $region18: #{tpu_custom_call.1} parent=11 // pred_check_branch
          %204 = sbr.rel (%p202) target = $region20
        $region19: #{tpu_custom_call.1} parent=11 // pred_region
          _
        $region20: #{tpu_custom_call.1} parent=11 // pred_fallthru
          _
      $region12: #{tpu_custom_call.1} parent=5 // pred_fallthru
        _
      %p205 = scmp.lt.s32.totalorder %s18, 4
      // Predicated region
      $region21: #{tpu_custom_call.1} parent=5 // pred_check
        %p206 = pneg %p205
      $region22: #{tpu_custom_call.1} parent=5 // pred_check_branch
        %208 = sbr.rel (%p206) target = $region24
      $region23: #{tpu_custom_call.1} parent=5 // pred_region
        // Predicated region
        $region25: #{tpu_custom_call.1} parent=23 // pred_check
          %p209 = pneg %p52
        $region26: #{tpu_custom_call.1} parent=23 // pred_check_branch
          %211 = sbr.rel (%p209) target = $region28
        $region27: #{tpu_custom_call.1} parent=23 // pred_region
          %p212 = scmp.lt.s32.totalorder %s25, 1
          %s213 = scalar_select %p212, %s25, 1
          %p214 = scmp.lt.s32.totalorder %s26, 1
          %s215 = scalar_select %p214, %s26, 1
          %s216 = smul.addr %s213, 2
          %s217 = sadd.s32 %s215, %s216
          %s218 = smul.addr %s217, 4
          %s219 = scalar_lea.vmem %s0, %s218
        $region28: #{tpu_custom_call.1} parent=23 // pred_fallthru
          _
      $region24: #{tpu_custom_call.1} parent=5 // pred_fallthru
        _
      %p220 = scmp.le.s32.totalorder 1, %s18
      %p221 = scmp.lt.s32.totalorder %s18, 5
      %p222 = pnand %p220, %p221
      %p223 = pneg %p222
      // Predicated region
      $region29: #{tpu_custom_call.1} parent=5 // pred_check
        _
      $region30: #{tpu_custom_call.1} parent=5 // pred_check_branch
        %225 = sbr.rel (%p222) target = $region32
      $region31: #{tpu_custom_call.1} parent=5 // pred_region
        %s226 = ssub.s32 %s18, 1
        %p227 = scmp.lt.s32.totalorder %s27, 1
        %s228 = scalar_select %p227, %s27, 1
        %p229 = scmp.lt.s32.totalorder %s28, 1
        %s230 = scalar_select %p229, %s28, 1
        %s231 = smul.addr %s228, 2
        %s232 = sadd.s32 %s230, %s231
        %s233 = smul.addr %s232, 4
        %s234 = scalar_lea.vmem %s0, %s233
        %p235 = pneg %p58
        %p236 = pneg %p55
        %p237 = pneg %p79
        %p238 = pneg %p76
        %p239 = pneg %p100
        %p240 = pneg %p97
        %p241 = pneg %p128
        %p242 = pneg %p125
        %s243 = sand.u32 %s115, 1
        %s244 = scalar_lea.sflag [#allocation3], %s243
        %s245 = sand.u32 %s115, 1
        %s246 = smul.addr %s245, 4
        %s247 = scalar_lea.vmem [#allocation2], %s246
        %p248 = pneg %p156
        %p249 = pneg %p153
        %s250 = sand.u32 %s143, 1
        %s251 = scalar_lea.sflag [#allocation5], %s250
        %s252 = sand.u32 %s143, 1
        %s253 = scalar_lea.vmem [#allocation4], %s252
        %p254 = pneg %p184
        %p255 = pneg %p181
        %p256 = scmp.lt.s32.totalorder %s27, 1
        %s257 = scalar_select %p256, %s27, 1
        %p258 = scmp.lt.s32.totalorder %s28, 1
        %s259 = scalar_select %p258, %s28, 1
        %s260 = smul.addr %s257, 2
        %s261 = sadd.s32 %s259, %s260
        %s262 = scalar_lea.vmem %s5, %s261
        %p263 = scmp.lt.s32.totalorder %s27, 1
        %s264 = scalar_select %p263, %s27, 1
        %p265 = scmp.lt.s32.totalorder %s28, 1
        %s266 = scalar_select %p265, %s28, 1
        %s267 = smul.addr %s264, 2
        %s268 = sadd.s32 %s266, %s267
        %s269 = smul.addr %s268, 4
        %s270 = scalar_lea.vmem %s0, %s269
        %p271 = scmp.lt.s32.totalorder %s27, 1
        %s272 = scalar_select %p271, %s27, 1
        %p273 = scmp.lt.s32.totalorder %s28, 1
        %s274 = scalar_select %p273, %s28, 1
        %s275 = smul.addr %s272, 2
        %s276 = sadd.s32 %s274, %s275
        %s277 = scalar_lea.vmem %s5, %s276
        %v278 = vld [vmem:[%s270] sm:$0xf]
        %v279 = vld [vmem:[%s1] sm:$0xff]
        %v280 = vld [vmem:[%s1 + $0x8] sm:$0xff]
        %v281 = vld [vmem:[%s2] sm:$0xff]
        %v282 = vld [vmem:[%s2 + $0x8] sm:$0xff]
        %vm283 = vcmask 31744
        %v285 = vsel %vm283, %v279, 0
        %v288 = vsel %vm283, %v280, 0
        %vm290 = vcmask 1043456
        %v292 = vsel %vm290, %v278, 0
        %294 = vmatprep.subr.mxu0 0.0
        %295 = vmatpush1.msra.mxu0 0.0
        %296 = vmatprep.subr.mxu0 0.0
        %297 = vmatpush1.msra.mxu0 0.0
        %298 = vmatprep.subr.mxu0 0.0
        %299 = vmatpush1.msra.mxu0 0.0
        %300 = vmatprep.subr.mxu0 0.0
        %301 = vmatpush1.msra.mxu0 0.0
        %302 = vmatprep.subr.mxu0 0.0
        %303 = vmatpush1.msra.mxu0 0.0
        %304 = vmatprep.subr.mxu0 0.0
        %305 = vmatpush1.msra.mxu0 0.0
        %306 = vmatprep.subr.mxu0 0.0
        %307 = vmatpush1.msra.mxu0 0.0
        %308 = vmatprep.subr.mxu0 0.0
        %309 = vmatpush1.msra.mxu0 0.0
        %310 = vmatprep.subr.mxu0 0.0
        %311 = vmatpush1.msra.mxu0 0.0
        %312 = vmatprep.subr.mxu0 0.0
        %313 = vmatpush1.msra.mxu0 0.0
        %314 = vmatprep.subr.mxu0 0.0
        %315 = vmatpush1.msra.mxu0 0.0
        %316 = vmatprep.subr.mxu0 0.0
        %317 = vmatpush1.msra.mxu0 0.0
        %318 = vmatprep.subr.mxu0 0.0
        %319 = vmatpush1.msra.mxu0 0.0
        %320 = vmatprep.subr.mxu0 0.0
        %321 = vmatpush1.msra.mxu0 0.0
        %322 = vmatprep.subr.mxu0 0.0
        %323 = vmatpush1.msra.mxu0 0.0
        %324 = vmatprep.subr.mxu0 0.0
        %325 = vmatpush1.msra.mxu0 %v292
        %326 = vmatprep.subr.mxu0 0.0
        %327 = vmatpush2.msra.mxu0 0.0
        %328 = vmatprep.subr.mxu0 0.0
        %329 = vmatpush2.msra.mxu0 0.0
        %330 = vmatprep.subr.mxu0 0.0
        %331 = vmatpush2.msra.mxu0 0.0
        %332 = vmatprep.subr.mxu0 0.0
        %333 = vmatpush2.msra.mxu0 0.0
        %334 = vmatprep.subr.mxu0 0.0
        %335 = vmatpush2.msra.mxu0 0.0
        %336 = vmatprep.subr.mxu0 0.0
        %337 = vmatpush2.msra.mxu0 0.0
        %338 = vmatprep.subr.mxu0 0.0
        %339 = vmatpush2.msra.mxu0 0.0
        %340 = vmatprep.subr.mxu0 0.0
        %341 = vmatpush2.msra.mxu0 0.0
        %342 = vmatprep.subr.mxu0 0.0
        %343 = vmatpush2.msra.mxu0 0.0
        %344 = vmatprep.subr.mxu0 0.0
        %345 = vmatpush2.msra.mxu0 0.0
        %346 = vmatprep.subr.mxu0 0.0
        %347 = vmatpush2.msra.mxu0 0.0
        %348 = vmatprep.subr.mxu0 0.0
        %349 = vmatpush2.msra.mxu0 0.0
        %350 = vmatprep.subr.mxu0 0.0
        %351 = vmatpush2.msra.mxu0 0.0
        %352 = vmatprep.subr.mxu0 0.0
        %353 = vmatpush2.msra.mxu0 0.0
        %354 = vmatprep.subr.mxu0 0.0
        %355 = vmatpush2.msra.mxu0 0.0
        %356 = vmatprep.subr.mxu0 0.0
        %357 = vmatpush2.msra.mxu0 0.0
        %358 = vmatprep.mubr.f32.mxu0 0.0
        %359 = vmatmul.mubr.f32.gmra.mxu0 %v285
        %v360 = vpop.f32.mrf.mxu0
        %v361 = vadd.f32 0.0, %v360
        %v362 = vpop.f32.mrf.mxu0
        %363 = vmatprep.mubr.f32.mxu0 0.0
        %364 = vmatmul.mubr.f32.gmra.mxu0 %v288
        %v365 = vpop.f32.mrf.mxu0
        %v366 = vadd.f32 0.0, %v365
        %v367 = vpop.f32.mrf.mxu0
        %368 = vdwg.mxu0
        %v369 = vmul.f32 %v361, 2.0
        %v370 = vmul.f32 %v366, 2.0
        %372 = vset.pattern.permute.xlu0 0
        %373 = vperm.xlu0 %372, %v281
        %v374 = vpop.permute.xlu0 %373
        %377 = vset.pattern.permute.xlu0 0
        %378 = vperm.xlu0 %377, %v282
        %v379 = vpop.permute.xlu0 %378
        %v381 = vsub.f32 %v374, %v369
        %v382 = vsub.f32 %v379, %v370
        %v383 = vlaneseq
        %v384 = vshrl.u32 %v383, 7
        %v385 = vadd.s32 %v384, 8
        %v386 = vmin.f32 %v381, %v382
        %v387 = vrot.slane %v386, 4
        %v388 = vmin.f32 %v386, %v387
        %v389 = vrot.slane %v388, 2
        %v390 = vmin.f32 %v388, %v389
        %v391 = vrot.slane %v390, 1
        %v392 = vmin.f32 %v390, %v391
        %vm393 = vcmp.eq.f32.partialorder %v381, %v392
        %vm394 = vcmp.eq.f32.partialorder %v382, %v392
        %v395 = vsel %vm393, %v384, 16
        %v396 = vsel %vm394, %v385, 16
        %vm397 = vcmp.lt.s32.totalorder %v395, %v396
        %v398 = vsel %vm397, %v395, %v396
        %v399 = vrot.slane %v398, 4
        %vm400 = vcmp.lt.s32.totalorder %v398, %v399
        %v401 = vsel %vm400, %v398, %v399
        %v402 = vrot.slane %v401, 2
        %vm403 = vcmp.lt.s32.totalorder %v401, %v402
        %v404 = vsel %vm403, %v401, %v402
        %v405 = vrot.slane %v404, 1
        %vm406 = vcmp.lt.s32.totalorder %v404, %v405
        %v407 = vsel %vm406, %v404, %v405
        %vm408 = vcmp.eq.s32.totalorder %v384, %v407
        %vm409 = vcmp.eq.s32.totalorder %v385, %v407
        %v410 = vsel %vm408, 1, 0
        %v411 = vsel %vm409, 1, 0
        %v412 = vcvt.s32.f32 %v410
        %v413 = vcvt.s32.f32 %v411
        %414 = vxpose.xlu0.b32.start [1/16] %v279, 128
        %415 = vxpose.xlu0.b32.cont [2/16] %v280, 128
        %416 = vxpose.xlu0.b32.cont [3/16] 0.0, 128
        %417 = vxpose.xlu0.b32.cont [4/16] 0.0, 128
        %418 = vxpose.xlu0.b32.cont [5/16] 0.0, 128
        %419 = vxpose.xlu0.b32.cont [6/16] 0.0, 128
        %420 = vxpose.xlu0.b32.cont [7/16] 0.0, 128
        %421 = vxpose.xlu0.b32.cont [8/16] 0.0, 128
        %422 = vxpose.xlu0.b32.cont [9/16] 0.0, 128
        %423 = vxpose.xlu0.b32.cont [10/16] 0.0, 128
        %424 = vxpose.xlu0.b32.cont [11/16] 0.0, 128
        %425 = vxpose.xlu0.b32.cont [12/16] 0.0, 128
        %426 = vxpose.xlu0.b32.cont [13/16] 0.0, 128
        %427 = vxpose.xlu0.b32.cont [14/16] 0.0, 128
        %428 = vxpose.xlu0.b32.cont [15/16] 0.0, 128
        %429 = vxpose.xlu0.b32.end [16/16] 0.0, 128
        %v430 = vpop.trf.xlu0
        %v431 = vpop.trf.xlu0
        %v432 = vpop.trf.xlu0
        %v433 = vpop.trf.xlu0
        %v434 = vpop.trf.xlu0
        %v435 = vpop.trf.xlu0
        %v436 = vpop.trf.xlu0
        %v437 = vpop.trf.xlu0
        %v438 = vpop.trf.xlu0
        %v439 = vpop.trf.xlu0
        %v440 = vpop.trf.xlu0
        %v441 = vpop.trf.xlu0
        %v442 = vpop.trf.xlu0
        %v443 = vpop.trf.xlu0
        %v444 = vpop.trf.xlu0
        %v445 = vpop.trf.xlu0
        %vm446 = vcmask 130048
        %v448 = vsel %vm446, %v430, 0
        %450 = vmatprep.subr.mxu0 0.0
        %451 = vmatpush1.msra.mxu0 0.0
        %452 = vmatprep.subr.mxu0 0.0
        %453 = vmatpush1.msra.mxu0 0.0
        %454 = vmatprep.subr.mxu0 0.0
        %455 = vmatpush1.msra.mxu0 0.0
        %456 = vmatprep.subr.mxu0 0.0
        %457 = vmatpush1.msra.mxu0 0.0
        %458 = vmatprep.subr.mxu0 0.0
        %459 = vmatpush1.msra.mxu0 0.0
        %460 = vmatprep.subr.mxu0 0.0
        %461 = vmatpush1.msra.mxu0 0.0
        %462 = vmatprep.subr.mxu0 0.0
        %463 = vmatpush1.msra.mxu0 0.0
        %464 = vmatprep.subr.mxu0 0.0
        %465 = vmatpush1.msra.mxu0 0.0
        %466 = vmatprep.subr.mxu0 0.0
        %467 = vmatpush1.msra.mxu0 0.0
        %468 = vmatprep.subr.mxu0 0.0
        %469 = vmatpush1.msra.mxu0 0.0
        %470 = vmatprep.subr.mxu0 0.0
        %471 = vmatpush1.msra.mxu0 0.0
        %472 = vmatprep.subr.mxu0 0.0
        %473 = vmatpush1.msra.mxu0 0.0
        %474 = vmatprep.subr.mxu0 0.0
        %475 = vmatpush1.msra.mxu0 0.0
        %476 = vmatprep.subr.mxu0 0.0
        %477 = vmatpush1.msra.mxu0 0.0
        %478 = vmatprep.subr.mxu0 0.0
        %479 = vmatpush1.msra.mxu0 %v413
        %480 = vmatprep.subr.mxu0 0.0
        %481 = vmatpush1.msra.mxu0 %v412
        %482 = vmatprep.subr.mxu0 0.0
        %483 = vmatpush2.msra.mxu0 0.0
        %484 = vmatprep.subr.mxu0 0.0
        %485 = vmatpush2.msra.mxu0 0.0
        %486 = vmatprep.subr.mxu0 0.0
        %487 = vmatpush2.msra.mxu0 0.0
        %488 = vmatprep.subr.mxu0 0.0
        %489 = vmatpush2.msra.mxu0 0.0
        %490 = vmatprep.subr.mxu0 0.0
        %491 = vmatpush2.msra.mxu0 0.0
        %492 = vmatprep.subr.mxu0 0.0
        %493 = vmatpush2.msra.mxu0 0.0
        %494 = vmatprep.subr.mxu0 0.0
        %495 = vmatpush2.msra.mxu0 0.0
        %496 = vmatprep.subr.mxu0 0.0
        %497 = vmatpush2.msra.mxu0 0.0
        %498 = vmatprep.subr.mxu0 0.0
        %499 = vmatpush2.msra.mxu0 0.0
        %500 = vmatprep.subr.mxu0 0.0
        %501 = vmatpush2.msra.mxu0 0.0
        %502 = vmatprep.subr.mxu0 0.0
        %503 = vmatpush2.msra.mxu0 0.0
        %504 = vmatprep.subr.mxu0 0.0
        %505 = vmatpush2.msra.mxu0 0.0
        %506 = vmatprep.subr.mxu0 0.0
        %507 = vmatpush2.msra.mxu0 0.0
        %508 = vmatprep.subr.mxu0 0.0
        %509 = vmatpush2.msra.mxu0 0.0
        %510 = vmatprep.subr.mxu0 0.0
        %511 = vmatpush2.msra.mxu0 0.0
        %512 = vmatprep.subr.mxu0 0.0
        %513 = vmatpush2.msra.mxu0 0.0
        %514 = vmatprep.mubr.f32.mxu0 0.0
        %515 = vmatmul.mubr.f32.gmra.mxu0 %v448
        %v516 = vpop.f32.mrf.mxu0
        %v517 = vadd.f32 0.0, %v516
        %v518 = vpop.f32.mrf.mxu0
        %519 = vdwg.mxu0
        %v520 = vsub.f32 %v517, %v278
        %v521 = vmul.f32 %v520, %v520
        %522 = vst [vmem:[%s247] sm:$0xf] %v517
        %523 = vst [vmem:[%s253] sm:$0x1] %v407
        %v524 = vsel %vm290, %v521, 0.0
        %525 = vadd.xlane.f32.xlu0 %v524
        %v526 = vpop.xlane.xlu0 %525
        %v527 = vrot.slane %v526, 4
        %v528 = vadd.f32 %v526, %v527
        %v529 = vrot.slane %v528, 2
        %v530 = vadd.f32 %v528, %v529
        %v531 = vrot.slane %v530, 1
        %v532 = vadd.f32 %v530, %v531
        %s533 = vtos %v532
        %v534 = vstv %s533
        %vm535 = vcmask 0
        %536 = vst.msk [vmem:[%s277] sm:$0x1] %vm535, %v534
        %s537 = sand.u32 %s115, 1
        %s538 = scalar_lea.sflag [#allocation3], %s537
        %s539 = sand.u32 %s115, 1
        %s540 = smul.addr %s539, 4
        %s541 = scalar_lea.vmem [#allocation2], %s540
        %s542 = sand.u32 %s143, 1
        %s543 = scalar_lea.sflag [#allocation5], %s542
        %s544 = sand.u32 %s143, 1
        %s545 = scalar_lea.vmem [#allocation4], %s544
        %p546 = scmp.lt.s32.totalorder %s27, 1
        %s547 = scalar_select %p546, %s27, 1
        %p548 = scmp.lt.s32.totalorder %s28, 1
        %s549 = scalar_select %p548, %s28, 1
        %s550 = smul.addr %s547, 2
        %s551 = sadd.s32 %s549, %s550
        %s552 = scalar_lea.vmem %s5, %s551
        // Predicated region
        $region33: #{tpu_custom_call.1} parent=31 // pred_check
          %p553 = pneg %p125
        $region34: #{tpu_custom_call.1} parent=31 // pred_check_branch
          %555 = sbr.rel (%p553) target = $region36
        $region35: #{tpu_custom_call.1} parent=31 // pred_region
          %s557 = ssub.s32 64, 64
          %558 = vsyncadd %s538, %s557
          %s559 = smul.addr %s27, 2
          %s560 = sadd.s32 %s28, %s559
          %s561 = smul.addr %s560, 64
          %s562 = scalar_lea.hbm %s3, %s561
          %s564 = sshll.u32 %s541, 4
          %s565 = int_to_ptr.vmem [resolvable:$true] %s564
          %567 = dma.vmem_to_hbm [thread:$0]  %s565, 64, %s562, %s538
        $region36: #{tpu_custom_call.1} parent=31 // pred_fallthru
          _
        // Predicated region
        $region37: #{tpu_custom_call.1} parent=31 // pred_check
          %p568 = pneg %p153
        $region38: #{tpu_custom_call.1} parent=31 // pred_check_branch
          %570 = sbr.rel (%p568) target = $region40
        $region39: #{tpu_custom_call.1} parent=31 // pred_region
          %s572 = ssub.s32 16, 16
          %573 = vsyncadd %s543, %s572
          %s574 = smul.addr %s27, 2
          %s575 = sadd.s32 %s28, %s574
          %s576 = smul.addr %s575, 16
          %s577 = scalar_lea.hbm %s4, %s576
          %s579 = sshll.u32 %s545, 4
          %s580 = int_to_ptr.vmem [resolvable:$true] %s579
          %582 = dma.vmem_to_hbm [thread:$0]  %s580, 16, %s577, %s543
        $region40: #{tpu_custom_call.1} parent=31 // pred_fallthru
          _
        // Predicated region
        $region41: #{tpu_custom_call.1} parent=31 // pred_check
          %p583 = pneg %p181
        $region42: #{tpu_custom_call.1} parent=31 // pred_check_branch
          %585 = sbr.rel (%p583) target = $region44
        $region43: #{tpu_custom_call.1} parent=31 // pred_region
          _
        $region44: #{tpu_custom_call.1} parent=31 // pred_fallthru
          _
      $region32: #{tpu_custom_call.1} parent=5 // pred_fallthru
        _
      %p586 = scmp.le.s32.totalorder 2, %s18
      // Predicated region
      $region45: #{tpu_custom_call.1} parent=5 // pred_check
        %p587 = pneg %p586
      $region46: #{tpu_custom_call.1} parent=5 // pred_check_branch
        %589 = sbr.rel (%p587) target = $region48
      $region47: #{tpu_custom_call.1} parent=5 // pred_region
        %s590 = ssub.s32 %s18, 2
        // Predicated region
        $region49: #{tpu_custom_call.1} parent=47 // pred_check
          %p591 = pneg %p131
        $region50: #{tpu_custom_call.1} parent=47 // pred_check_branch
          %593 = sbr.rel (%p591) target = $region52
        $region51: #{tpu_custom_call.1} parent=47 // pred_region
          %s594 = sand.u32 %s116, 1
          %s595 = scalar_lea.sflag [#allocation3], %s594
          %s596 = sand.u32 %s116, 1
          %s597 = smul.addr %s596, 4
          %s598 = scalar_lea.vmem [#allocation2], %s597
          %599 = dma.done %s595, 64
        $region52: #{tpu_custom_call.1} parent=47 // pred_fallthru
          _
        // Predicated region
        $region53: #{tpu_custom_call.1} parent=47 // pred_check
          %p600 = pneg %p159
        $region54: #{tpu_custom_call.1} parent=47 // pred_check_branch
          %602 = sbr.rel (%p600) target = $region56
        $region55: #{tpu_custom_call.1} parent=47 // pred_region
          %s603 = sand.u32 %s144, 1
          %s604 = scalar_lea.sflag [#allocation5], %s603
          %s605 = sand.u32 %s144, 1
          %s606 = scalar_lea.vmem [#allocation4], %s605
          %607 = dma.done %s604, 16
        $region56: #{tpu_custom_call.1} parent=47 // pred_fallthru
          _
        // Predicated region
        $region57: #{tpu_custom_call.1} parent=47 // pred_check
          %p608 = pneg %p187
        $region58: #{tpu_custom_call.1} parent=47 // pred_check_branch
          %610 = sbr.rel (%p608) target = $region60
        $region59: #{tpu_custom_call.1} parent=47 // pred_region
          %p611 = scmp.lt.s32.totalorder %s29, 1
          %s612 = scalar_select %p611, %s29, 1
          %p613 = scmp.lt.s32.totalorder %s30, 1
          %s614 = scalar_select %p613, %s30, 1
          %s615 = smul.addr %s612, 2
          %s616 = sadd.s32 %s614, %s615
          %s617 = scalar_lea.vmem %s5, %s616
        $region60: #{tpu_custom_call.1} parent=47 // pred_fallthru
          _
      $region48: #{tpu_custom_call.1} parent=5 // pred_fallthru
        _
    $region6: #{tpu_custom_call.1} parent=1 // loop_footer
      %s22 = sadd.s32 1, %s18
    $region7: #{tpu_custom_call.1} parent=1 // loop_footer_branch
      %17 = sbr.rel target = $region3
    $region8: #{tpu_custom_call.1} parent=1 // loop_exit
      _
    %618 = vsyncpa [#allocation3], 1
    %s619 = scalar_lea.sflag [#allocation3], 1
    %620 = vsyncpa %s619, 1
    %621 = vsyncpa [#allocation5], 1
    %s622 = scalar_lea.sflag [#allocation5], 1
    %623 = vsyncpa %s622, 1

</llo_original>
